<compile_context>
chip_gen: v7x
topology: tpu7x:2x2x1
jax: 0.10.0
libtpu: 0.0.40
codegen_flags: <defaults>
</compile_context>

<pallas_src>
import functools

import numpy as np
import jax
import jax.numpy as jnp
from jax.experimental import pallas as pl
from jax.experimental.pallas import tpu as pltpu


# ----------------------------------------------------------------------------
# Small helpers
# ----------------------------------------------------------------------------
def _round_up(a, b):
    return ((a + b - 1) // b) * b


def _vmem_budget_bytes():
    """Generation-aware VMEM budget (bytes usable for pipelined blocks)."""
    try:
        cap = int(pltpu.get_tpu_info().vmem_capacity_bytes)
    except Exception:
        cap = 64 * 1024 * 1024  # conservative default: v7x per-TensorCore VMEM
    # ~25% headroom for compiler scratch / semaphores:
    #   128 MiB (v5e/v6e) -> 96 MiB budget,  64 MiB (v7x) -> 48 MiB budget.
    return (3 * cap) // 4


def _source_index_math(N, M, mode):
    """PyTorch interpolate(align_corners=False) index math, per output column.

    Returns numpy arrays (i0, i1, w0, w1) of length M with i0/i1 in [0, N-1] and
    w0 + w1 == 1.  'nearest' is PyTorch's legacy nearest (floor(j*scale)), not
    'nearest-exact'."""
    j = np.arange(M)
    scale = N / M
    if mode == "nearest":
        i0 = np.minimum(np.floor(j * scale).astype(np.int64), N - 1)
        i1 = i0
        w0 = np.ones(M, np.float32)
        w1 = np.zeros(M, np.float32)
    elif mode == "linear":
        src = np.maximum((j + 0.5) * scale - 0.5, 0.0)
        i0 = np.minimum(np.floor(src).astype(np.int64), N - 1)
        i1 = np.minimum(i0 + 1, N - 1)
        lam = (src - i0).astype(np.float32)
        w0 = (1.0 - lam).astype(np.float32)
        w1 = lam
    else:
        raise NotImplementedError(f"mode={mode!r}")
    return i0, i1, w0, w1


# ----------------------------------------------------------------------------
# Cached weight builders (host numpy once, then resident device arrays)
# ----------------------------------------------------------------------------
@functools.lru_cache(maxsize=32)
def _dense_weights(N, M, Mp, mode, dtype_name):
    """Dense (N, Mp) interpolation matrix; columns >= M are zero (lane padding)."""
    i0, i1, w0, w1 = _source_index_math(N, M, mode)
    W = np.zeros((N, Mp), np.float32)
    j = np.arange(M)
    np.add.at(W, (i0, j), w0)
    np.add.at(W, (i1, j), w1)
    return jnp.asarray(W).astype(dtype_name)


@functools.lru_cache(maxsize=32)
def _banded_weights(N, M, Mp, TM, TK, Np, mode, dtype_name):
    """Banded weights: (n_col_tiles, KB*TK, TM) blocks plus per-tile band-start
    block indices (int32).  For output tile j only input rows
    [start_blk[j]*TK, start_blk[j]*TK + KB*TK) carry non-zero weights."""
    i0, i1, w0, w1 = _source_index_math(N, M, mode)
    n_ct = Mp // TM
    j = np.arange(M)
    tile = j // TM
    lo = np.full(n_ct, N - 1, np.int64)
    hi = np.zeros(n_ct, np.int64)
    np.minimum.at(lo, tile, i0)
    np.maximum.at(hi, tile, i1)
    n_kb = Np // TK
    start_blk = lo // TK
    KB = int(np.max(((hi - start_blk * TK) // TK) + 1))
    KB = min(max(KB, 1), n_kb)
    start_blk = np.clip(start_blk, 0, n_kb - KB)
    base = start_blk * TK
    Wb = np.zeros((n_ct, KB * TK, TM), np.float32)
    np.add.at(Wb, (tile, i0 - base[tile], j % TM), w0)
    np.add.at(Wb, (tile, i1 - base[tile], j % TM), w1)
    return (jnp.asarray(Wb).astype(dtype_name),
            jnp.asarray(start_blk.astype(np.int32)),
            int(KB))


# ----------------------------------------------------------------------------
# Tile selection
# ----------------------------------------------------------------------------
def _choose_col_tile_dense(Mp, N, w_item, budget):
    cands = [Mp] + [t for t in (4096, 2048, 1024, 512, 256, 128)
                    if t < Mp and Mp % t == 0]
    for tm in cands:
        if 2 * N * tm * w_item <= budget // 2:      # double-buffered W block
            return tm
    return 128


def _choose_col_tile_banded(Mp, M, N, w_item, budget, TK):
    scale = N / M
    for tm in (1024, 512, 256, 128):
        if Mp % tm:
            continue
        kb_est = int(np.ceil((tm * scale + TK + 2) / TK)) + 1
        if 2 * kb_est * TK * tm * w_item <= budget // 3:
            return tm
    return 128


def _choose_row_tile(R, bytes_per_row, budget_left):
    r8 = _round_up(R, 8)
    tr = max(8, budget_left // max(bytes_per_row, 1))
    tr = min(tr, 2048, r8)
    if tr >= 256:
        tr = (tr // 256) * 256        # MXU-row alignment (v6e/v7x 256x256; fine on v5e)
    else:
        tr = max(8, (tr // 8) * 8)
    if tr >= R and R >= 512:
        # keep >=2 row tiles so both v7x TensorCores get work
        tr = max(256, _round_up((R + 1) // 2, 256))
    if tr >= R:
        tr = R                        # single full-extent tile (always layout-legal)
    return int(tr)


# ----------------------------------------------------------------------------
# Kernels
# ----------------------------------------------------------------------------
def _dense_kernel(x_ref, w_ref, o_ref):
    # Native-dtype MXU matmul (bf16 x bf16 when the input is bf16); f32 accumulate.
    o_ref[...] = jnp.dot(
        x_ref[...], w_ref[...], preferred_element_type=jnp.float32
    ).astype(o_ref.dtype)


def _banded_kernel(ks_ref, x_ref, w_ref, o_ref, acc_ref):
    del ks_ref  # only consumed by the index_maps (scalar prefetch)
    kk = pl.program_id(2)

    @pl.when(kk == 0)
    def _():
        acc_ref[...] = jnp.zeros_like(acc_ref)

    acc_ref[...] += jnp.dot(
        x_ref[...], w_ref[...], preferred_element_type=jnp.float32
    )

    @pl.when(kk == pl.num_programs(2) - 1)
    def _():
        o_ref[...] = acc_ref[...].astype(o_ref.dtype)


# ----------------------------------------------------------------------------
# Wrapper: Resample1d.forward
# ----------------------------------------------------------------------------
def resample1d(x, new_length, mode="linear"):
    """x: (B, F, N) array.  Returns (B, F, new_length), matching
    torch.nn.functional.interpolate(x, size=new_length, mode=mode,
                                    align_corners=False (non-nearest))."""
    assert mode in ("linear", "nearest", "bicubic")
    if mode == "bicubic":
        # TODO(synk): PyTorch rejects 'bicubic' for 3-D (B, F, N) input too.
        raise NotImplementedError("bicubic is not valid for 3-D (B, F, N) input")

    B, F, N = x.shape
    M = int(new_length)
    out_dtype = x.dtype

    # Integer-ratio 'nearest' is pure data movement; skip the MXU path entirely.
    if mode == "nearest":
        if M % N == 0:
            return jnp.repeat(x, M // N, axis=-1)
        if N % M == 0:
            return x[..., :: (N // M)]

    R = B * F
    x2 = x.reshape(R, N)                        # free reshape, no HBM traffic

    Mp = _round_up(M, 128)                      # lane-dense output blocks
    low_precision = x.dtype.name in ("bfloat16", "float16")
    w_dtype_name = x.dtype.name if low_precision else "float32"
    w_item = 2 if low_precision else 4
    x_item = x.dtype.itemsize

    budget = _vmem_budget_bytes()
    TK = 128

    dense_min_fits = 2 * N * 128 * w_item <= budget // 2
    use_banded = not dense_min_fits
    if not use_banded and N % TK == 0 and N >= 1024:
        tm_est = _choose_col_tile_banded(Mp, M, N, w_item, budget, TK)
        band_est = _round_up(int(np.ceil(tm_est * N / M)) + TK + 2, TK)
        use_banded = 2 * band_est <= N          # band is meaningfully narrower than N

    if use_banded:
        Np = _round_up(N, TK)
        if Np != N:
            # Rare fallback (dense W block cannot fit VMEM and N is not
            # 128-aligned): one extra HBM pass to pad the contraction axis.
            x2 = jnp.pad(x2, ((0, 0), (0, Np - N)))
        TM = _choose_col_tile_banded(Mp, M, N, w_item, budget, TK)
        Wb, kstart, KB = _banded_weights(N, M, Mp, TM, TK, Np, mode, w_dtype_name)
        n_ct = Mp // TM
        wb_block = 2 * TK * TM * w_item                       # double-buffered W block
        bytes_per_row = 2 * TK * x_item + 2 * TM * x_item + 2 * TM * 4
        TR = _choose_row_tile(R, bytes_per_row, budget - wb_block)
        n_rt = pl.cdiv(R, TR)
        grid = (n_rt, n_ct, KB)

        out = pl.pallas_call(
            _banded_kernel,
            out_shape=jax.ShapeDtypeStruct((R, Mp), out_dtype),
            grid_spec=pltpu.PrefetchScalarGridSpec(
                num_scalar_prefetch=1,
                grid=grid,
                in_specs=[
                    # x band: start block comes from the scalar-prefetched table
                    pl.BlockSpec((TR, TK), lambda i, j, kk, ks: (i, ks[j] + kk)),
                    # banded W block for output tile j, contraction step kk
                    pl.BlockSpec((None, TK, TM), lambda i, j, kk, ks: (j, kk, 0)),
                ],
                out_specs=pl.BlockSpec((TR, TM), lambda i, j, kk, ks: (i, j)),
                scratch_shapes=[pltpu.VMEM((TR, TM), jnp.float32)],
            ),
            compiler_params=pltpu.CompilerParams(
                dimension_semantics=("parallel", "parallel", "arbitrary"),
                vmem_limit_bytes=budget,
            ),
        )(kstart, x2, Wb)
    else:
        W = _dense_weights(N, M, Mp, mode, w_dtype_name)
        TM = _choose_col_tile_dense(Mp, N, w_item, budget)
        w_block = 2 * N * TM * w_item
        bytes_per_row = 2 * N * x_item + 2 * TM * x_item + TM * 4
        TR = _choose_row_tile(R, bytes_per_row, budget - w_block)
        n_rt = pl.cdiv(R, TR)
        n_ct = Mp // TM

        # Put the operand that is cheaper to re-stream on the inner grid axis.
        rows_outer = True
        if n_rt > 1 and n_ct > 1:
            traffic_rows_outer = n_rt * N * Mp * w_item + R * N * x_item
            traffic_cols_outer = N * Mp * w_item + n_ct * R * N * x_item
            rows_outer = traffic_rows_outer <= traffic_cols_outer

        if rows_outer:
            grid = (n_rt, n_ct)
            x_spec = pl.BlockSpec((TR, N), lambda i, j: (i, 0))
            w_spec = pl.BlockSpec((N, TM), lambda i, j: (0, j))
            o_spec = pl.BlockSpec((TR, TM), lambda i, j: (i, j))
        else:
            grid = (n_ct, n_rt)
            x_spec = pl.BlockSpec((TR, N), lambda j, i: (i, 0))
            w_spec = pl.BlockSpec((N, TM), lambda j, i: (0, j))
            o_spec = pl.BlockSpec((TR, TM), lambda j, i: (i, j))

        out = pl.pallas_call(
            _dense_kernel,
            out_shape=jax.ShapeDtypeStruct((R, Mp), out_dtype),
            grid=grid,
            in_specs=[x_spec, w_spec],
            out_specs=o_spec,
            compiler_params=pltpu.CompilerParams(
                dimension_semantics=("parallel", "parallel"),
                vmem_limit_bytes=budget,
            ),
        )(x2, W)

    if Mp != M:
        out = out[:, :M]            # drop lane-padding columns (fuses under jit)
    return out.reshape(B, F, M)


# ----------------------------------------------------------------------------
# Pure-JAX reference (direct transcription of the PyTorch index math)
# ----------------------------------------------------------------------------
def _interpolate_ref(x, new_length, mode="linear"):
    B, F, N = x.shape
    M = int(new_length)
    i0, i1, w0, w1 = _source_index_math(N, M, mode)
    xf = jnp.asarray(x, jnp.float32)
    x0 = jnp.take(xf, jnp.asarray(i0), axis=-1)
    x1 = jnp.take(xf, jnp.asarray(i1), axis=-1)
    out = jnp.asarray(w0) * x0 + jnp.asarray(w1) * x1
    return out.astype(x.dtype)


if __name__ == "__main__":
    key = jax.random.PRNGKey(0)
    k1, k2, k3 = jax.random.split(key, 3)

    # 1) Small dense-path test (typical module shapes): (B, F, N) = (2, 4, 16).
    B, F, N = 2, 4, 16
    M = 37
    x = jax.random.normal(k1, (B, F, N), dtype=jnp.float32)

    y = resample1d(x, M, mode="linear")
    jax.block_until_ready(y)
    assert y.shape == (B, F, M) and y.dtype == x.dtype
    y_ref = _interpolate_ref(x, M, mode="linear")
    assert np.allclose(np.asarray(y), np.asarray(y_ref), atol=1e-5, rtol=1e-5)

    # Nearest, non-integer ratio (MXU path) and integer ratio (copy path).
    y_n = resample1d(x, M, mode="nearest")
    jax.block_until_ready(y_n)
    assert np.allclose(np.asarray(y_n),
                       np.asarray(_interpolate_ref(x, M, mode="nearest")))
    y_up = resample1d(x, 2 * N, mode="nearest")
    jax.block_until_ready(y_up)
    assert np.allclose(np.asarray(y_up),
                       np.asarray(_interpolate_ref(x, 2 * N, mode="nearest")))

    # 2) bf16 input -> native-dtype (bf16) MXU path, dense.
    xb = jax.random.normal(k2, (B, F, N), dtype=jnp.bfloat16)
    yb = resample1d(xb, M, mode="linear")
    jax.block_until_ready(yb)
    assert yb.dtype == jnp.bfloat16
    yb_ref = _interpolate_ref(xb, M, mode="linear")
    assert np.allclose(np.asarray(yb, dtype=np.float32),
                       np.asarray(yb_ref, dtype=np.float32), atol=5e-2, rtol=5e-2)

    # 3) Banded-contraction path (N large and 128-aligned).
    N2, M2 = 2048, 700
    x2 = jax.random.normal(k3, (B, F, N2), dtype=jnp.float32)
    y2 = resample1d(x2, M2, mode="linear")
    jax.block_until_ready(y2)
    assert y2.shape == (B, F, M2)
    y2_ref = _interpolate_ref(x2, M2, mode="linear")
    assert np.allclose(np.asarray(y2), np.asarray(y2_ref), atol=1e-4, rtol=1e-4)

    print("KERNEL_OK")
</pallas_src>

<mosaic_0001>
module attributes {stable_mosaic.version = 11 : i64} {
  func.func @_dense_kernel(%arg0: i32, %arg1: i32, %arg2: memref<8x16xf32, #tpu.memory_space<vmem>>, %arg3: memref<16x128xf32, #tpu.memory_space<vmem>>, %arg4: memref<8x128xf32, #tpu.memory_space<vmem>>) attributes {dimension_semantics = [#tpu.dimension_semantics<parallel>, #tpu.dimension_semantics<parallel>], iteration_bounds = array<i64: 1, 1>, scalar_prefetch = 0 : i64, scratch_operands = 0 : i64, tpu.core_type = #tpu.core_type<tc>, window_params = [{transform_indices = @transform_0, window_bounds = array<i64: 8, 16>}, {transform_indices = @transform_1, window_bounds = array<i64: 16, 128>}, {transform_indices = @transform_2, window_bounds = array<i64: 8, 128>}]} {
    %c0 = arith.constant 0 : index
    %c0_0 = arith.constant 0 : index
    %0 = vector.load %arg2[%c0, %c0_0] : memref<8x16xf32, #tpu.memory_space<vmem>>, vector<8x16xf32>
    %c0_1 = arith.constant 0 : index
    %c0_2 = arith.constant 0 : index
    %1 = vector.load %arg3[%c0_1, %c0_2] : memref<16x128xf32, #tpu.memory_space<vmem>>, vector<16x128xf32>
    %cst = arith.constant dense<0.000000e+00> : vector<8x128xf32>
    %2 = tpu.matmul %0, %1, %cst {dimension_numbers = #tpu.dot_dimension_numbers<[1], [0], [0], [1], [0, 0, 1, 1], [], []>} : vector<8x16xf32>, vector<16x128xf32>, vector<8x128xf32> -> vector<8x128xf32>
    %c0_3 = arith.constant 0 : index
    %c0_4 = arith.constant 0 : index
    %3 = vector.load %arg4[%c0_3, %c0_4] : memref<8x128xf32, #tpu.memory_space<vmem>>, vector<8x128xf32>
    tpu.vector_store %arg4[%c0_3, %c0_4], %2 {strides = array<i32>} : memref<8x128xf32, #tpu.memory_space<vmem>>, vector<8x128xf32>,
    return
  }
  func.func @transform_0(%arg0: i32, %arg1: i32) -> (i32, i32) {
    %c0_i32 = arith.constant 0 : i32
    %c0_i32_0 = arith.constant 0 : i32
    return %arg0, %c0_i32 : i32, i32
  }
  func.func @transform_1(%arg0: i32, %arg1: i32) -> (i32, i32) {
    %c0_i32 = arith.constant 0 : i32
    %c0_i32_0 = arith.constant 0 : i32
    return %c0_i32, %arg1 : i32, i32
  }
  func.func @transform_2(%arg0: i32, %arg1: i32) -> (i32, i32) {
    %c0_i32 = arith.constant 0 : i32
    return %arg0, %arg1 : i32, i32
  }
}

</mosaic_0001>

<llo_original>
// kernel: tpu_custom_call.1
$region0: #{tpu_custom_call.1}
  #allocation0 [shape = 'u32[]', space=smem, size = 0x4, offset = 0x4, fixed_abs, tag = 'smem constant byte address 0x4 - core index']
  #allocation1 [shape = 'u32[144,128]{1,0:T(1,128)}', space=vmem, size = 0x12000, scoped, tag = 'internal scratch']
  %s0 = inlined_call_operand.hbm [shape: f32[8,16], index: 0, kind: input, shape index: {}]
  %s1 = inlined_call_operand.hbm [shape: f32[16,128], index: 1, kind: input, shape index: {}]
  %s2 = inlined_call_operand.hbm [shape: f32[8,128], index: 2, kind: output, shape index: {}]
  %s3 = sld [smem:[#allocation0]]
  $region26: #{tpu_custom_call.1} parent=0
    _
  %s5 = ssub.s32 1, %s3
  %s6 = scalar_select 0, %s5, %s3
  $region1: #{tpu_custom_call.1} parent=0
    #allocation2 [shape = 'u8[4096]{0}', space=vmem, size = 0x1000, scoped, tag = 'input window, operand 0, single buffered']
    #allocation3 [shape = 's32[1]{0}', space=sflag, size = 0x4, scoped, tag = 'scoped memory for tpu_custom_call.1']
    #allocation4 [shape = 's32[1]{0}', space=sflag, size = 0x4, scoped, tag = 'scoped memory for tpu_custom_call.1']
    #allocation5 [shape = 'u8[8192]{0}', space=vmem, size = 0x2000, scoped, tag = 'input window, operand 1, single buffered']
    #allocation6 [shape = 's32[1]{0}', space=sflag, size = 0x4, scoped, tag = 'scoped memory for tpu_custom_call.1']
    #allocation7 [shape = 'u8[4096]{0}', space=vmem, size = 0x1000, scoped, tag = 'output window, operand 0, single buffered']
    %7 = vsyncpa [#allocation3], 0
    %8 = vsyncpa [#allocation6], 0
    %9 = vsyncpa [#allocation4], 0
    // Predicated region
    $region2: #{tpu_custom_call.1} parent=1 // pred_check
      _
    $region3: #{tpu_custom_call.1} parent=1 // pred_check_branch
      %11 = sbr.rel (0) target = $region5
    $region4: #{tpu_custom_call.1} parent=1 // pred_region
      %s13 = ssub.s32 128, 128
      %14 = vsyncadd [#allocation3], %s13
      %s16 = sshll.u32 [#allocation2], 4
      %s17 = int_to_ptr.vmem [resolvable:$true] %s16
      %19 = dma.hbm_to_vmem [thread:$0]  %s0, 128, %s17, [#allocation3]
    $region5: #{tpu_custom_call.1} parent=1 // pred_fallthru
      _
    // Predicated region
    $region6: #{tpu_custom_call.1} parent=1 // pred_check
      _
    $region7: #{tpu_custom_call.1} parent=1 // pred_check_branch
      %21 = sbr.rel (0) target = $region9
    $region8: #{tpu_custom_call.1} parent=1 // pred_region
      %s23 = ssub.s32 256, 256
      %24 = vsyncadd [#allocation6], %s23
      %s25 = sshll.u32 [#allocation5], 4
      %s26 = int_to_ptr.vmem [resolvable:$true] %s25
      %31 = dma.hbm_to_vmem [thread:$0]  %s1, 256, %s26, [#allocation6], 128, 128, 8
    $region9: #{tpu_custom_call.1} parent=1 // pred_fallthru
      _
    // Predicated region
    $region10: #{tpu_custom_call.1} parent=1 // pred_check
      _
    $region11: #{tpu_custom_call.1} parent=1 // pred_check_branch
      %33 = sbr.rel (0) target = $region13
    $region12: #{tpu_custom_call.1} parent=1 // pred_region
      %34 = dma.done [#allocation3], 128
    $region13: #{tpu_custom_call.1} parent=1 // pred_fallthru
      _
    // Predicated region
    $region14: #{tpu_custom_call.1} parent=1 // pred_check
      _
    $region15: #{tpu_custom_call.1} parent=1 // pred_check_branch
      %36 = sbr.rel (0) target = $region17
    $region16: #{tpu_custom_call.1} parent=1 // pred_region
      %37 = dma.done [#allocation6], 256
    $region17: #{tpu_custom_call.1} parent=1 // pred_fallthru
      _
    %v38 = vld [vmem:[#allocation2] sm:$0xff]
    %v39 = vld [vmem:[#allocation5] sm:$0xff]
    %v40 = vld [vmem:[#allocation5 + $0x8] sm:$0xff]
    %vm41 = vcmask 130048
    %v43 = vsel %vm41, %v38, 0
    %45 = vmatprep.subr.mxu0 0.0
    %46 = vmatpush1.msra.mxu0 %v39
    %47 = vmatprep.subr.mxu0 0.0
    %48 = vmatpush1.msra.mxu0 %v40
    %49 = vmatprep.subr.mxu0 0.0
    %50 = vmatpush1.msra.mxu0 0.0
    %51 = vmatprep.subr.mxu0 0.0
    %52 = vmatpush1.msra.mxu0 0.0
    %53 = vmatprep.subr.mxu0 0.0
    %54 = vmatpush1.msra.mxu0 0.0
    %55 = vmatprep.subr.mxu0 0.0
    %56 = vmatpush1.msra.mxu0 0.0
    %57 = vmatprep.subr.mxu0 0.0
    %58 = vmatpush1.msra.mxu0 0.0
    %59 = vmatprep.subr.mxu0 0.0
    %60 = vmatpush1.msra.mxu0 0.0
    %61 = vmatprep.subr.mxu0 0.0
    %62 = vmatpush1.msra.mxu0 0.0
    %63 = vmatprep.subr.mxu0 0.0
    %64 = vmatpush1.msra.mxu0 0.0
    %65 = vmatprep.subr.mxu0 0.0
    %66 = vmatpush1.msra.mxu0 0.0
    %67 = vmatprep.subr.mxu0 0.0
    %68 = vmatpush1.msra.mxu0 0.0
    %69 = vmatprep.subr.mxu0 0.0
    %70 = vmatpush1.msra.mxu0 0.0
    %71 = vmatprep.subr.mxu0 0.0
    %72 = vmatpush1.msra.mxu0 0.0
    %73 = vmatprep.subr.mxu0 0.0
    %74 = vmatpush1.msra.mxu0 0.0
    %75 = vmatprep.subr.mxu0 0.0
    %76 = vmatpush1.msra.mxu0 0.0
    %77 = vmatprep.subr.mxu0 0.0
    %78 = vmatpush1.msra.mxu0 0.0
    %79 = vmatprep.subr.mxu0 0.0
    %80 = vmatpush1.msra.mxu0 0.0
    %81 = vmatprep.subr.mxu0 0.0
    %82 = vmatpush1.msra.mxu0 0.0
    %83 = vmatprep.subr.mxu0 0.0
    %84 = vmatpush1.msra.mxu0 0.0
    %85 = vmatprep.subr.mxu0 0.0
    %86 = vmatpush1.msra.mxu0 0.0
    %87 = vmatprep.subr.mxu0 0.0
    %88 = vmatpush1.msra.mxu0 0.0
    %89 = vmatprep.subr.mxu0 0.0
    %90 = vmatpush1.msra.mxu0 0.0
    %91 = vmatprep.subr.mxu0 0.0
    %92 = vmatpush1.msra.mxu0 0.0
    %93 = vmatprep.subr.mxu0 0.0
    %94 = vmatpush1.msra.mxu0 0.0
    %95 = vmatprep.subr.mxu0 0.0
    %96 = vmatpush1.msra.mxu0 0.0
    %97 = vmatprep.subr.mxu0 0.0
    %98 = vmatpush1.msra.mxu0 0.0
    %99 = vmatprep.subr.mxu0 0.0
    %100 = vmatpush1.msra.mxu0 0.0
    %101 = vmatprep.subr.mxu0 0.0
    %102 = vmatpush1.msra.mxu0 0.0
    %103 = vmatprep.subr.mxu0 0.0
    %104 = vmatpush1.msra.mxu0 0.0
    %105 = vmatprep.subr.mxu0 0.0
    %106 = vmatpush1.msra.mxu0 0.0
    %107 = vmatprep.subr.mxu0 0.0
    %108 = vmatpush1.msra.mxu0 0.0
    %109 = vmatprep.mubr.f32.mxu0 0.0
    %110 = vmatmul.mubr.f32.gmra.mrb[0].mxu0 %v43
    %v111 = vpop.f32.mrb[0].mxu0
    %v112 = vadd.f32 0.0, %v111
    %v113 = vpop.f32.mrb[0].mxu0
    %114 = vdwg.mxu0
    %115 = vst [vmem:[#allocation7] sm:$0xff] %v112
    // Predicated region
    $region18: #{tpu_custom_call.1} parent=1 // pred_check
      _
    $region19: #{tpu_custom_call.1} parent=1 // pred_check_branch
      %117 = sbr.rel (0) target = $region21
    $region20: #{tpu_custom_call.1} parent=1 // pred_region
      %s119 = ssub.s32 128, 128
      %120 = vsyncadd [#allocation4], %s119
      %s122 = sshll.u32 [#allocation7], 4
      %s123 = int_to_ptr.vmem [resolvable:$true] %s122
      %125 = dma.vmem_to_hbm [thread:$0]  %s123, 128, %s2, [#allocation4]
    $region21: #{tpu_custom_call.1} parent=1 // pred_fallthru
      _
    // Predicated region
    $region22: #{tpu_custom_call.1} parent=1 // pred_check
      _
    $region23: #{tpu_custom_call.1} parent=1 // pred_check_branch
      %127 = sbr.rel (0) target = $region25
    $region24: #{tpu_custom_call.1} parent=1 // pred_region
      %128 = dma.done [#allocation4], 128
    $region25: #{tpu_custom_call.1} parent=1 // pred_fallthru
      _
    %129 = vsyncpa [#allocation3], 1
    %130 = vsyncpa [#allocation6], 1
    %131 = vsyncpa [#allocation4], 1

</llo_original>
